<compile_context>
chip_gen: v5e
topology: v5e:2x2
jax: 0.10.0
libtpu: 0.0.40
codegen_flags: <defaults>
</compile_context>

<pallas_src>
import jax
import jax.numpy as jnp
from jax import lax
from jax.experimental import pallas as pl
from jax.experimental.pallas import tpu as pltpu


def _banded_conv_weight(w_oihw, W):
    """Per-dy block-tridiagonal matrices folding the dx taps + W-padding.

    w_oihw: (Cout, Cin, 3, 3) PyTorch conv weight.
    Returns (3, W*Cin, W*Cout) with
      band[dy][m*Cin + ci, j*Cout + co] = w[dy, dx, ci, co]  for m = j + dx - 1
    (zero outside 0 <= m < W, which implements the left/right zero padding).
    """
    w_hwio = jnp.transpose(w_oihw, (2, 3, 1, 0)).astype(jnp.float32)  # (3,3,Ci,Co)
    eye0 = jnp.eye(W, dtype=jnp.float32)
    eye_up = jnp.eye(W, k=1, dtype=jnp.float32)    # m = j - 1  (dx = 0)
    eye_dn = jnp.eye(W, k=-1, dtype=jnp.float32)   # m = j + 1  (dx = 2)
    bands = []
    for dy in range(3):
        band = (jnp.kron(eye_up, w_hwio[dy, 0])
                + jnp.kron(eye0, w_hwio[dy, 1])
                + jnp.kron(eye_dn, w_hwio[dy, 2]))
        bands.append(band)
    return jnp.stack(bands)                         # (3, W*Cin, W*Cout)


def _make_kernel(H, W, C):
    WC = W * C

    def kernel(x_ref, band1_ref, b1_ref, band2_ref, b2_ref, gamma_ref,
               o_ref, pad_ref):
        # x_ref/o_ref: (1, H, WC) lane-dense slabs.  band*: (3, WC, WC).
        # b*: (1, WC) channel bias tiled across W.  gamma: (1,) scalar in SMEM.
        # pad_ref: (H+2, WC) scratch; rows 0 and H+1 are the vertical zero halo
        # (left/right padding is folded into the banded weight).
        zrow = jnp.zeros((1, WC), jnp.float32)
        pad_ref[0:1, :] = zrow
        pad_ref[H + 1:H + 2, :] = zrow

        def conv(band_ref, b_ref):
            # Three MXU matmuls with K = W*C; dx folded into the banded weight.
            acc = jnp.dot(pad_ref[0:H, :], band_ref[0],
                          preferred_element_type=jnp.float32)
            acc = acc + jnp.dot(pad_ref[1:H + 1, :], band_ref[1],
                                preferred_element_type=jnp.float32)
            acc = acc + jnp.dot(pad_ref[2:H + 2, :], band_ref[2],
                                preferred_element_type=jnp.float32)
            return acc + b_ref[...]                 # bias added once, after taps

        x2d = x_ref[0]                              # (H, WC)
        pad_ref[1:H + 1, :] = x2d                   # interior <- x
        h = jnp.maximum(conv(band1_ref, b1_ref), 0.0)   # relu(conv1(x))
        pad_ref[1:H + 1, :] = h                     # reuse scratch for conv2
        out = conv(band2_ref, b2_ref)               # conv2(.)
        gamma = gamma_ref[0]
        o_ref[0] = jnp.maximum(x2d + gamma * out, 0.0)  # relu(x + gamma*out)

    return kernel


def resblock_forward_nhwc(x_nhwc, w1_oihw, b1, w2_oihw, b2, gamma):
    """NHWC fast path (no layout transposes). x_nhwc: [N, H, W, C] float32."""
    N, H, W, C = x_nhwc.shape
    WC = W * C

    x2 = x_nhwc.reshape(N, H, WC).astype(jnp.float32)      # free reshape
    band1 = _banded_conv_weight(w1_oihw, W)                 # (3, WC, WC)
    band2 = _banded_conv_weight(w2_oihw, W)
    b1_t = jnp.tile(b1.astype(jnp.float32), W).reshape(1, WC)
    b2_t = jnp.tile(b2.astype(jnp.float32), W).reshape(1, WC)
    gamma_1d = gamma.reshape(1).astype(jnp.float32)

    out2 = pl.pallas_call(
        _make_kernel(H, W, C),
        out_shape=jax.ShapeDtypeStruct((N, H, WC), jnp.float32),
        grid=(N,),
        in_specs=[
            pl.BlockSpec((1, H, WC), lambda n: (n, 0, 0)),       # x slab
            pl.BlockSpec((3, WC, WC), lambda n: (0, 0, 0)),      # band1 (resident)
            pl.BlockSpec((1, WC), lambda n: (0, 0)),             # bias1
            pl.BlockSpec((3, WC, WC), lambda n: (0, 0, 0)),      # band2 (resident)
            pl.BlockSpec((1, WC), lambda n: (0, 0)),             # bias2
            pl.BlockSpec(memory_space=pltpu.MemorySpace.SMEM),   # gamma scalar
        ],
        out_specs=pl.BlockSpec((1, H, WC), lambda n: (n, 0, 0)),
        scratch_shapes=[pltpu.VMEM((H + 2, WC), jnp.float32)],
        compiler_params=pltpu.CompilerParams(
            dimension_semantics=("parallel",),        # megacore split on v7x
            vmem_limit_bytes=16 * 1024 * 1024),       # fits all generations
    )(x2, band1, b1_t, band2, b2_t, gamma_1d)

    return out2.reshape(N, H, W, C)


@jax.jit
def resblock_forward(x_nchw, w1_oihw, b1, w2_oihw, b2, gamma):
    """PyTorch-parity entry point: x_nchw [N, C, H, W] -> [N, C, H, W].

    The NCHW<->NHWC transposes exist only to honor the PyTorch layout contract;
    an NHWC end-to-end model should call resblock_forward_nhwc directly.
    """
    x_nhwc = jnp.transpose(x_nchw, (0, 2, 3, 1))
    out_nhwc = resblock_forward_nhwc(x_nhwc, w1_oihw, b1, w2_oihw, b2, gamma)
    return jnp.transpose(out_nhwc, (0, 3, 1, 2))


def _reference_forward(x, w1, b1, w2, b2, gamma):
    """Pure-JAX NCHW reference matching the PyTorch module semantics."""
    dn = lax.conv_dimension_numbers(x.shape, w1.shape, ('NCHW', 'OIHW', 'NCHW'))

    def conv(a, w, b):
        y = lax.conv_general_dilated(a, w, window_strides=(1, 1),
                                     padding=((1, 1), (1, 1)),
                                     dimension_numbers=dn,
                                     precision=lax.Precision.HIGHEST)
        return y + b.reshape(1, -1, 1, 1)

    h = jnp.maximum(conv(x, w1, b1), 0.0)
    out = conv(h, w2, b2)
    return jnp.maximum(x + gamma[0] * out, 0.0)


if __name__ == "__main__":
    N, C, H, W = 2, 4, 16, 16

    key = jax.random.PRNGKey(0)
    kx, kw1, kb1, kw2, kb2 = jax.random.split(key, 5)

    x = jax.random.normal(kx, (N, C, H, W), dtype=jnp.float32)
    w1 = jax.random.normal(kw1, (C, C, 3, 3), dtype=jnp.float32) * 0.1
    b1 = jax.random.normal(kb1, (C,), dtype=jnp.float32) * 0.1
    w2 = jax.random.normal(kw2, (C, C, 3, 3), dtype=jnp.float32) * 0.1
    b2 = jax.random.normal(kb2, (C,), dtype=jnp.float32) * 0.1
    # PyTorch __init__ sets gamma = 0; use a nonzero value here so the conv
    # branch actually contributes to the output (deterministic, in-script).
    gamma = jnp.array([0.25], dtype=jnp.float32)

    out = resblock_forward(x, w1, b1, w2, b2, gamma)
    out = jax.block_until_ready(out)

    ref = jax.block_until_ready(_reference_forward(x, w1, b1, w2, b2, gamma))
    assert out.shape == (N, C, H, W)
    assert jnp.allclose(out, ref, atol=1e-3, rtol=1e-3), "mismatch vs reference"

    print("KERNEL_OK")
</pallas_src>

<mosaic_0001>
module attributes {stable_mosaic.version = 11 : i64} {
  func.func @kernel(%arg0: i32, %arg1: memref<1x16x64xf32, #tpu.memory_space<vmem>>, %arg2: memref<3x64x64xf32, #tpu.memory_space<vmem>>, %arg3: memref<1x64xf32, #tpu.memory_space<vmem>>, %arg4: memref<3x64x64xf32, #tpu.memory_space<vmem>>, %arg5: memref<1x64xf32, #tpu.memory_space<vmem>>, %arg6: memref<1xf32, #tpu.memory_space<smem>>, %arg7: memref<1x16x64xf32, #tpu.memory_space<vmem>>, %arg8: memref<18x64xf32, #tpu.memory_space<vmem>>) attributes {dimension_semantics = [#tpu.dimension_semantics<parallel>], iteration_bounds = array<i64: 2>, scalar_prefetch = 0 : i64, scratch_operands = 1 : i64, tpu.core_type = #tpu.core_type<tc>, window_params = [{transform_indices = @transform_0, window_bounds = array<i64: 1, 16, 64>}, {pipeline_mode = #tpu.pipeline_mode<synchronous>, transform_indices = @transform_1, window_bounds = array<i64: 3, 64, 64>}, {pipeline_mode = #tpu.pipeline_mode<synchronous>, transform_indices = @transform_2, window_bounds = array<i64: 1, 64>}, {pipeline_mode = #tpu.pipeline_mode<synchronous>, transform_indices = @transform_3, window_bounds = array<i64: 3, 64, 64>}, {pipeline_mode = #tpu.pipeline_mode<synchronous>, transform_indices = @transform_4, window_bounds = array<i64: 1, 64>}, {transform_indices = @transform_5, window_bounds = array<i64: 1>}, {transform_indices = @transform_6, window_bounds = array<i64: 1, 16, 64>}]} {
    %cst = arith.constant 0.000000e+00 : f32
    %0 = vector.broadcast %cst : f32 to vector<1x64xf32>
    %c0 = arith.constant 0 : index
    %c0_0 = arith.constant 0 : index
    %1 = vector.load %arg8[%c0, %c0_0] : memref<18x64xf32, #tpu.memory_space<vmem>>, vector<1x64xf32>
    tpu.vector_store %arg8[%c0, %c0_0], %0 {strides = array<i32>} : memref<18x64xf32, #tpu.memory_space<vmem>>, vector<1x64xf32>,
    %c17 = arith.constant 17 : index
    %c0_1 = arith.constant 0 : index
    %2 = vector.load %arg8[%c17, %c0_1] : memref<18x64xf32, #tpu.memory_space<vmem>>, vector<1x64xf32>
    tpu.vector_store %arg8[%c17, %c0_1], %0 {strides = array<i32>} : memref<18x64xf32, #tpu.memory_space<vmem>>, vector<1x64xf32>,
    %c0_2 = arith.constant 0 : index
    %c0_3 = arith.constant 0 : index
    %c0_4 = arith.constant 0 : index
    %3 = vector.load %arg1[%c0_2, %c0_3, %c0_4] : memref<1x16x64xf32, #tpu.memory_space<vmem>>, vector<1x16x64xf32>
    %4 = vector.shape_cast %3 : vector<1x16x64xf32> to vector<16x64xf32>
    %c1 = arith.constant 1 : index
    %c0_5 = arith.constant 0 : index
    %5 = vector.load %arg8[%c1, %c0_5] : memref<18x64xf32, #tpu.memory_space<vmem>>, vector<16x64xf32>
    tpu.vector_store %arg8[%c1, %c0_5], %4 {strides = array<i32>} : memref<18x64xf32, #tpu.memory_space<vmem>>, vector<16x64xf32>,
    %c0_6 = arith.constant 0 : index
    %c0_7 = arith.constant 0 : index
    %6 = vector.load %arg8[%c0_6, %c0_7] : memref<18x64xf32, #tpu.memory_space<vmem>>, vector<16x64xf32>
    %c0_8 = arith.constant 0 : index
    %c0_9 = arith.constant 0 : index
    %c0_10 = arith.constant 0 : index
    %7 = vector.load %arg2[%c0_8, %c0_9, %c0_10] : memref<3x64x64xf32, #tpu.memory_space<vmem>>, vector<1x64x64xf32>
    %8 = vector.shape_cast %7 : vector<1x64x64xf32> to vector<64x64xf32>
    %cst_11 = arith.constant dense<0.000000e+00> : vector<16x64xf32>
    %9 = tpu.matmul %6, %8, %cst_11 {dimension_numbers = #tpu.dot_dimension_numbers<[1], [0], [0], [1], [0, 0, 1, 1], [], []>} : vector<16x64xf32>, vector<64x64xf32>, vector<16x64xf32> -> vector<16x64xf32>
    %c1_12 = arith.constant 1 : index
    %c0_13 = arith.constant 0 : index
    %10 = vector.load %arg8[%c1_12, %c0_13] : memref<18x64xf32, #tpu.memory_space<vmem>>, vector<16x64xf32>
    %c1_14 = arith.constant 1 : index
    %c0_15 = arith.constant 0 : index
    %c0_16 = arith.constant 0 : index
    %11 = vector.load %arg2[%c1_14, %c0_15, %c0_16] : memref<3x64x64xf32, #tpu.memory_space<vmem>>, vector<1x64x64xf32>
    %12 = vector.shape_cast %11 : vector<1x64x64xf32> to vector<64x64xf32>
    %cst_17 = arith.constant dense<0.000000e+00> : vector<16x64xf32>
    %13 = tpu.matmul %10, %12, %cst_17 {dimension_numbers = #tpu.dot_dimension_numbers<[1], [0], [0], [1], [0, 0, 1, 1], [], []>} : vector<16x64xf32>, vector<64x64xf32>, vector<16x64xf32> -> vector<16x64xf32>
    %14 = arith.addf %9, %13 : vector<16x64xf32>
    %c2 = arith.constant 2 : index
    %c0_18 = arith.constant 0 : index
    %15 = vector.load %arg8[%c2, %c0_18] : memref<18x64xf32, #tpu.memory_space<vmem>>, vector<16x64xf32>
    %c2_19 = arith.constant 2 : index
    %c0_20 = arith.constant 0 : index
    %c0_21 = arith.constant 0 : index
    %16 = vector.load %arg2[%c2_19, %c0_20, %c0_21] : memref<3x64x64xf32, #tpu.memory_space<vmem>>, vector<1x64x64xf32>
    %17 = vector.shape_cast %16 : vector<1x64x64xf32> to vector<64x64xf32>
    %cst_22 = arith.constant dense<0.000000e+00> : vector<16x64xf32>
    %18 = tpu.matmul %15, %17, %cst_22 {dimension_numbers = #tpu.dot_dimension_numbers<[1], [0], [0], [1], [0, 0, 1, 1], [], []>} : vector<16x64xf32>, vector<64x64xf32>, vector<16x64xf32> -> vector<16x64xf32>
    %19 = arith.addf %14, %18 : vector<16x64xf32>
    %c0_23 = arith.constant 0 : index
    %c0_24 = arith.constant 0 : index
    %20 = vector.load %arg3[%c0_23, %c0_24] : memref<1x64xf32, #tpu.memory_space<vmem>>, vector<1x64xf32>
    %21 = vector.broadcast %20 : vector<1x64xf32> to vector<16x64xf32>
    %22 = arith.addf %19, %21 : vector<16x64xf32>
    %cst_25 = arith.constant 0.000000e+00 : f32
    %23 = vector.broadcast %cst_25 : f32 to vector<16x64xf32>
    %24 = arith.maximumf %22, %23 : vector<16x64xf32>
    %c1_26 = arith.constant 1 : index
    %c0_27 = arith.constant 0 : index
    %25 = vector.load %arg8[%c1_26, %c0_27] : memref<18x64xf32, #tpu.memory_space<vmem>>, vector<16x64xf32>
    tpu.vector_store %arg8[%c1_26, %c0_27], %24 {strides = array<i32>} : memref<18x64xf32, #tpu.memory_space<vmem>>, vector<16x64xf32>,
    %c0_28 = arith.constant 0 : index
    %c0_29 = arith.constant 0 : index
    %26 = vector.load %arg8[%c0_28, %c0_29] : memref<18x64xf32, #tpu.memory_space<vmem>>, vector<16x64xf32>
    %c0_30 = arith.constant 0 : index
    %c0_31 = arith.constant 0 : index
    %c0_32 = arith.constant 0 : index
    %27 = vector.load %arg4[%c0_30, %c0_31, %c0_32] : memref<3x64x64xf32, #tpu.memory_space<vmem>>, vector<1x64x64xf32>
    %28 = vector.shape_cast %27 : vector<1x64x64xf32> to vector<64x64xf32>
    %cst_33 = arith.constant dense<0.000000e+00> : vector<16x64xf32>
    %29 = tpu.matmul %26, %28, %cst_33 {dimension_numbers = #tpu.dot_dimension_numbers<[1], [0], [0], [1], [0, 0, 1, 1], [], []>} : vector<16x64xf32>, vector<64x64xf32>, vector<16x64xf32> -> vector<16x64xf32>
    %c1_34 = arith.constant 1 : index
    %c0_35 = arith.constant 0 : index
    %30 = vector.load %arg8[%c1_34, %c0_35] : memref<18x64xf32, #tpu.memory_space<vmem>>, vector<16x64xf32>
    %c1_36 = arith.constant 1 : index
    %c0_37 = arith.constant 0 : index
    %c0_38 = arith.constant 0 : index
    %31 = vector.load %arg4[%c1_36, %c0_37, %c0_38] : memref<3x64x64xf32, #tpu.memory_space<vmem>>, vector<1x64x64xf32>
    %32 = vector.shape_cast %31 : vector<1x64x64xf32> to vector<64x64xf32>
    %cst_39 = arith.constant dense<0.000000e+00> : vector<16x64xf32>
    %33 = tpu.matmul %30, %32, %cst_39 {dimension_numbers = #tpu.dot_dimension_numbers<[1], [0], [0], [1], [0, 0, 1, 1], [], []>} : vector<16x64xf32>, vector<64x64xf32>, vector<16x64xf32> -> vector<16x64xf32>
    %34 = arith.addf %29, %33 : vector<16x64xf32>
    %c2_40 = arith.constant 2 : index
    %c0_41 = arith.constant 0 : index
    %35 = vector.load %arg8[%c2_40, %c0_41] : memref<18x64xf32, #tpu.memory_space<vmem>>, vector<16x64xf32>
    %c2_42 = arith.constant 2 : index
    %c0_43 = arith.constant 0 : index
    %c0_44 = arith.constant 0 : index
    %36 = vector.load %arg4[%c2_42, %c0_43, %c0_44] : memref<3x64x64xf32, #tpu.memory_space<vmem>>, vector<1x64x64xf32>
    %37 = vector.shape_cast %36 : vector<1x64x64xf32> to vector<64x64xf32>
    %cst_45 = arith.constant dense<0.000000e+00> : vector<16x64xf32>
    %38 = tpu.matmul %35, %37, %cst_45 {dimension_numbers = #tpu.dot_dimension_numbers<[1], [0], [0], [1], [0, 0, 1, 1], [], []>} : vector<16x64xf32>, vector<64x64xf32>, vector<16x64xf32> -> vector<16x64xf32>
    %39 = arith.addf %34, %38 : vector<16x64xf32>
    %c0_46 = arith.constant 0 : index
    %c0_47 = arith.constant 0 : index
    %40 = vector.load %arg5[%c0_46, %c0_47] : memref<1x64xf32, #tpu.memory_space<vmem>>, vector<1x64xf32>
    %41 = vector.broadcast %40 : vector<1x64xf32> to vector<16x64xf32>
    %42 = arith.addf %39, %41 : vector<16x64xf32>
    %c0_48 = arith.constant 0 : index
    %43 = memref.load %arg6[%c0_48] : memref<1xf32, #tpu.memory_space<smem>>
    %44 = vector.broadcast %43 : f32 to vector<16x64xf32>
    %45 = arith.mulf %44, %42 : vector<16x64xf32>
    %46 = arith.addf %4, %45 : vector<16x64xf32>
    %cst_49 = arith.constant 0.000000e+00 : f32
    %47 = vector.broadcast %cst_49 : f32 to vector<16x64xf32>
    %48 = arith.maximumf %46, %47 : vector<16x64xf32>
    %c0_50 = arith.constant 0 : index
    %c0_51 = arith.constant 0 : index
    %c0_52 = arith.constant 0 : index
    %49 = vector.load %arg7[%c0_50, %c0_51, %c0_52] : memref<1x16x64xf32, #tpu.memory_space<vmem>>, vector<1x16x64xf32>
    %50 = vector.shape_cast %49 : vector<1x16x64xf32> to vector<16x64xf32>
    %51 = vector.shape_cast %48 : vector<16x64xf32> to vector<1x16x64xf32>
    tpu.vector_store %arg7[%c0_50, %c0_51, %c0_52], %51 {strides = array<i32>} : memref<1x16x64xf32, #tpu.memory_space<vmem>>, vector<1x16x64xf32>,
    return
  }
  func.func @transform_0(%arg0: i32) -> (i32, i32, i32) {
    %c0_i32 = arith.constant 0 : i32
    %c0_i32_0 = arith.constant 0 : i32
    %c0_i32_1 = arith.constant 0 : i32
    return %arg0, %c0_i32, %c0_i32_0 : i32, i32, i32
  }
  func.func @transform_1(%arg0: i32) -> (i32, i32, i32) {
    %c0_i32 = arith.constant 0 : i32
    %c0_i32_0 = arith.constant 0 : i32
    %c0_i32_1 = arith.constant 0 : i32
    %c0_i32_2 = arith.constant 0 : i32
    return %c0_i32, %c0_i32_0, %c0_i32_1 : i32, i32, i32
  }
  func.func @transform_2(%arg0: i32) -> (i32, i32) {
    %c0_i32 = arith.constant 0 : i32
    %c0_i32_0 = arith.constant 0 : i32
    %c0_i32_1 = arith.constant 0 : i32
    return %c0_i32, %c0_i32_0 : i32, i32
  }
  func.func @transform_3(%arg0: i32) -> (i32, i32, i32) {
    %c0_i32 = arith.constant 0 : i32
    %c0_i32_0 = arith.constant 0 : i32
    %c0_i32_1 = arith.constant 0 : i32
    %c0_i32_2 = arith.constant 0 : i32
    return %c0_i32, %c0_i32_0, %c0_i32_1 : i32, i32, i32
  }
  func.func @transform_4(%arg0: i32) -> (i32, i32) {
    %c0_i32 = arith.constant 0 : i32
    %c0_i32_0 = arith.constant 0 : i32
    %c0_i32_1 = arith.constant 0 : i32
    return %c0_i32, %c0_i32_0 : i32, i32
  }
  func.func @transform_5(%arg0: i32) -> i32 {
    %c0_i32 = arith.constant 0 : i32
    %c0_i32_0 = arith.constant 0 : i32
    return %c0_i32 : i32
  }
  func.func @transform_6(%arg0: i32) -> (i32, i32, i32) {
    %c0_i32 = arith.constant 0 : i32
    %c0_i32_0 = arith.constant 0 : i32
    %c0_i32_1 = arith.constant 0 : i32
    return %arg0, %c0_i32, %c0_i32_0 : i32, i32, i32
  }
}

</mosaic_0001>

<llo_original>
// kernel: tile.13
$region0: #{tile.13}
  #allocation0 [shape = 's32[1]{0}', space=sflag, size = 0x4, scoped, tag = 'scoped memory for tile.13']
  %s0 = inlined_call_operand.vmem [shape: f32[4], index: 0, kind: input, shape index: {}]
  %s1 = inlined_call_operand.vmem [shape: f32[16,4], index: 1, kind: output, shape index: {}]
  // Predicated region
  $region2: #{tile.13} parent=0 // pred_check
    _
  $region3: #{tile.13} parent=0 // pred_check_branch
    %3 = sbr.rel (0) target = $region5
  $region4: #{tile.13} parent=0 // pred_region
    _
  $region5: #{tile.13} parent=0 // pred_fallthru
    _
  %v4 = vld [vmem:[%s0] ss:$0 sm:$0xff]
  %5 = vst [vmem:[%s1] sm:$0xff] %v4
  %s6 = scalar_lea.vmem %s1, 8
  %7 = vst [vmem:[%s6] sm:$0xff] %v4

// kernel: tile.14
$region0: #{tile.14}
  %s0 = inlined_call_operand.vmem [shape: f32[16,4], index: 0, kind: input, shape index: {}]
  %s1 = inlined_call_operand.vmem [shape: f32[1,64], index: 1, kind: output, shape index: {}]
  $region1: #{tile.14} parent=0
    #allocation0 [shape = 'u8[4096]{0}', space=vmem, size = 0x1000, scoped, tag = 'scoped mem for output reshape']
    %v2 = vld [vmem:[%s0] sm:$0x1]
    %vm3 = vcmask 31744
    %4 = vst.msk [vmem:[#allocation0] sm:$0x1] %vm3, %v2
    %s5 = scalar_lea.vmem %s0, 15
    %v6 = vld [vmem:[%s5] sm:$0x1]
    %7 = vrot.lane.b32.xlu0 %v6, 60
    %v8 = vpop.permute.xlu0 %7
    %vm9 = vcmask 523744
    %10 = vst.msk [vmem:[#allocation0] sm:$0x1] %vm9, %v8
    %s11 = scalar_lea.vmem %s0, 14
    %v12 = vld [vmem:[%s11] sm:$0x1]
    %13 = vrot.lane.b32.xlu0 %v12, 56
    %v14 = vpop.permute.xlu0 %13
    %vm15 = vcmask 490944
    %16 = vst.msk [vmem:[#allocation0] sm:$0x1] %vm15, %v14
    %s17 = scalar_lea.vmem %s0, 13
    %v18 = vld [vmem:[%s17] sm:$0x1]
    %19 = vrot.lane.b32.xlu0 %v18, 52
    %v20 = vpop.permute.xlu0 %19
    %vm21 = vcmask 458144
    %22 = vst.msk [vmem:[#allocation0] sm:$0x1] %vm21, %v20
    %s23 = scalar_lea.vmem %s0, 12
    %v24 = vld [vmem:[%s23] sm:$0x1]
    %25 = vrot.lane.b32.xlu0 %v24, 48
    %v26 = vpop.permute.xlu0 %25
    %vm27 = vcmask 425344
    %28 = vst.msk [vmem:[#allocation0] sm:$0x1] %vm27, %v26
    %s29 = scalar_lea.vmem %s0, 11
    %v30 = vld [vmem:[%s29] sm:$0x1]
    %31 = vrot.lane.b32.xlu0 %v30, 44
    %v32 = vpop.permute.xlu0 %31
    %vm33 = vcmask 392544
    %34 = vst.msk [vmem:[#allocation0] sm:$0x1] %vm33, %v32
    %s35 = scalar_lea.vmem %s0, 10
    %v36 = vld [vmem:[%s35] sm:$0x1]
    %37 = vrot.lane.b32.xlu0 %v36, 40
    %v38 = vpop.permute.xlu0 %37
    %vm39 = vcmask 359744
    %40 = vst.msk [vmem:[#allocation0] sm:$0x1] %vm39, %v38
    %s41 = scalar_lea.vmem %s0, 9
    %v42 = vld [vmem:[%s41] sm:$0x1]
    %43 = vrot.lane.b32.xlu0 %v42, 36
    %v44 = vpop.permute.xlu0 %43
    %vm45 = vcmask 326944
    %46 = vst.msk [vmem:[#allocation0] sm:$0x1] %vm45, %v44
    %s47 = scalar_lea.vmem %s0, 8
    %v48 = vld [vmem:[%s47] sm:$0x1]
    %49 = vrot.lane.b32.xlu0 %v48, 32
    %v50 = vpop.permute.xlu0 %49
    %vm51 = vcmask 294144
    %52 = vst.msk [vmem:[#allocation0] sm:$0x1] %vm51, %v50
    %s53 = scalar_lea.vmem %s0, 7
    %v54 = vld [vmem:[%s53] sm:$0x1]
    %55 = vrot.lane.b32.xlu0 %v54, 28
    %v56 = vpop.permute.xlu0 %55
    %vm57 = vcmask 261344
    %58 = vst.msk [vmem:[#allocation0] sm:$0x1] %vm57, %v56
    %s59 = scalar_lea.vmem %s0, 6
    %v60 = vld [vmem:[%s59] sm:$0x1]
    %61 = vrot.lane.b32.xlu0 %v60, 24
    %v62 = vpop.permute.xlu0 %61
    %vm63 = vcmask 228544
    %64 = vst.msk [vmem:[#allocation0] sm:$0x1] %vm63, %v62
    %s65 = scalar_lea.vmem %s0, 5
    %v66 = vld [vmem:[%s65] sm:$0x1]
    %67 = vrot.lane.b32.xlu0 %v66, 20
    %v68 = vpop.permute.xlu0 %67
    %vm69 = vcmask 195744
    %70 = vst.msk [vmem:[#allocation0] sm:$0x1] %vm69, %v68
    %s71 = scalar_lea.vmem %s0, 4
    %v72 = vld [vmem:[%s71] sm:$0x1]
    %73 = vrot.lane.b32.xlu0 %v72, 16
    %v74 = vpop.permute.xlu0 %73
    %vm75 = vcmask 162944
    %76 = vst.msk [vmem:[#allocation0] sm:$0x1] %vm75, %v74
    %s77 = scalar_lea.vmem %s0, 3
    %v78 = vld [vmem:[%s77] sm:$0x1]
    %79 = vrot.lane.b32.xlu0 %v78, 12
    %v80 = vpop.permute.xlu0 %79
    %vm81 = vcmask 130144
    %82 = vst.msk [vmem:[#allocation0] sm:$0x1] %vm81, %v80
    %s83 = scalar_lea.vmem %s0, 2
    %v84 = vld [vmem:[%s83] sm:$0x1]
    %85 = vrot.lane.b32.xlu0 %v84, 8
    %v86 = vpop.permute.xlu0 %85
    %vm87 = vcmask 97344
    %88 = vst.msk [vmem:[#allocation0] sm:$0x1] %vm87, %v86
    %s89 = scalar_lea.vmem %s0, 1
    %v90 = vld [vmem:[%s89] sm:$0x1]
    %91 = vrot.lane.b32.xlu0 %v90, 4
    %v92 = vpop.permute.xlu0 %91
    %vm93 = vcmask 64544
    %94 = vst.msk [vmem:[#allocation0] sm:$0x1] %vm93, %v92
    %s96 = ssub.s32 2, 1
    %v97 = vld [vmem:[#allocation0] sm:%s96]
    %s99 = ssub.s32 2, 1
    %100 = vst [vmem:[%s1] sm:%s99] %v97

// kernel: resblock_forward.1
$region0: #{resblock_forward.1}
  #allocation0 [shape = 'u32[]', space=smem, size = 0x4, offset = 0x4, fixed_abs, tag = 'smem constant byte address 0x4 - core index']
  #allocation1 [shape = 'u32[72,128]{1,0:T(1,128)}', space=vmem, size = 0x9000, scoped, tag = 'internal scratch']
  #allocation2 [shape = 'f32[18,64]{1,0:T(8,128)}', space=vmem, size = 0x3000, scoped, tag = 'scratch operand']
  #allocation3 [shape = 'f32[1]{0:T(128)S(6)}', space=smem, size = 0x200, scoped, tag = 'scoped memory for resblock_forward.1']
  %s0 = inlined_call_operand.vmem [shape: f32[2,16,64], index: 0, kind: input, shape index: {}]
  %s1 = inlined_call_operand.vmem [shape: f32[3,64,64], index: 1, kind: input, shape index: {}]
  %s2 = inlined_call_operand.vmem [shape: f32[1,64], index: 2, kind: input, shape index: {}]
  %s3 = inlined_call_operand.vmem [shape: f32[3,64,64], index: 3, kind: input, shape index: {}]
  %s4 = inlined_call_operand.vmem [shape: f32[1,64], index: 4, kind: input, shape index: {}]
  %s5 = inlined_call_operand.<no memory space> [shape: f32[1], index: 5, kind: input, shape index: {}]
  %s6 = inlined_call_operand.vmem [shape: f32[2,16,64], index: 6, kind: output, shape index: {}]
  %s7 = sld [smem:[#allocation0]]
  $region57: #{resblock_forward.1} parent=0
    _
  %s9 = ssub.s32 1, %s7
  %s10 = scalar_select 0, %s9, %s7
  %11 = sst [smem:[#allocation3]] %s5
  loop: start=0, step=1, limit=4
  $region2: #{resblock_forward.1} parent=0 // loop_pre_header
    _
  $region3: #{resblock_forward.1} parent=0 // loop_header
    %s13 = sphi 0, %s17
    %p14 = scmp.ge.s32.totalorder %s13, 4
    %s23 = sphi 0, %s25
    %s26 = sphi 0, %s23
    %s27 = sphi 0, %s26
    %s43 = sphi 0, %s27
    %s47 = sphi 0, %s47
    %s49 = sphi 0, %s47
    %s50 = sphi 0, %s49
    %s64 = sphi 0, %s50
    %s68 = sphi 0, %s68
    %s70 = sphi 0, %s68
    %s71 = sphi 0, %s70
    %s85 = sphi 0, %s71
    %s89 = sphi 0, %s89
    %s91 = sphi 0, %s89
    %s92 = sphi 0, %s91
    %s106 = sphi 0, %s92
    %s110 = sphi 0, %s110
    %s112 = sphi 0, %s110
    %s113 = sphi 0, %s112
    %s127 = sphi 0, %s113
    %s131 = sphi 0, %s131
    %s133 = sphi 0, %s131
    %s134 = sphi 0, %s133
    %s148 = sphi 0, %s134
    %s154 = sphi 0, %s156
    %s157 = sphi 0, %s154
    %s158 = sphi 0, %s157
    %s174 = sphi 0, %s158
  $region4: #{resblock_forward.1} parent=0 // loop_header_branch
    %16 = sbr.rel (%p14) target = $region8
  $region5: #{resblock_forward.1} parent=0 // loop_body
    %s18 = ssub.s32 %s13, 1
    %s19 = ssub.s32 %s13, 2
    %s20 = sadd.s32 %s13, 1
    %s21 = ssub.s32 %s13, %s20
    %p22 = scmp.eq.s32.totalorder %s21, 0
    %s24 = sadd.s32 %s23, 1
    %s25 = scalar_select %p22, %s23, %s24
    %p28 = pneg %p22
    %p29 = scmp.eq.s32.totalorder %s13, 1
    %p30 = por %p28, %p29
    %p31 = scmp.ne.s32.totalorder %s23, %s26
    %p32 = scmp.eq.s32.totalorder %s13, 0
    %p33 = por %p31, %p32
    %p34 = scmp.ne.s32.totalorder %s23, %s26
    %p35 = scmp.eq.s32.totalorder %s18, 1
    %p36 = por %p34, %p35
    %p37 = scmp.ne.s32.totalorder %s26, %s27
    %p38 = scmp.eq.s32.totalorder %s18, 0
    %p39 = por %p37, %p38
    %p40 = scmp.ne.s32.totalorder %s26, %s27
    %p41 = scmp.eq.s32.totalorder %s19, 1
    %p42 = por %p40, %p41
    %p44 = scmp.ne.s32.totalorder %s27, %s43
    %p45 = scmp.eq.s32.totalorder %s19, 0
    %p46 = por %p44, %p45
    %s48 = sadd.s32 %s47, 1
    %p51 = scmp.eq.s32.totalorder %s13, 1
    %p52 = scmp.ne.s32.totalorder %s47, %s49
    %p53 = scmp.eq.s32.totalorder %s13, 0
    %p54 = por %p52, %p53
    %p55 = scmp.ne.s32.totalorder %s47, %s49
    %p56 = scmp.eq.s32.totalorder %s18, 1
    %p57 = por %p55, %p56
    %p58 = scmp.ne.s32.totalorder %s49, %s50
    %p59 = scmp.eq.s32.totalorder %s18, 0
    %p60 = por %p58, %p59
    %p61 = scmp.ne.s32.totalorder %s49, %s50
    %p62 = scmp.eq.s32.totalorder %s19, 1
    %p63 = por %p61, %p62
    %p65 = scmp.ne.s32.totalorder %s50, %s64
    %p66 = scmp.eq.s32.totalorder %s19, 0
    %p67 = por %p65, %p66
    %s69 = sadd.s32 %s68, 1
    %p72 = scmp.eq.s32.totalorder %s13, 1
    %p73 = scmp.ne.s32.totalorder %s68, %s70
    %p74 = scmp.eq.s32.totalorder %s13, 0
    %p75 = por %p73, %p74
    %p76 = scmp.ne.s32.totalorder %s68, %s70
    %p77 = scmp.eq.s32.totalorder %s18, 1
    %p78 = por %p76, %p77
    %p79 = scmp.ne.s32.totalorder %s70, %s71
    %p80 = scmp.eq.s32.totalorder %s18, 0
    %p81 = por %p79, %p80
    %p82 = scmp.ne.s32.totalorder %s70, %s71
    %p83 = scmp.eq.s32.totalorder %s19, 1
    %p84 = por %p82, %p83
    %p86 = scmp.ne.s32.totalorder %s71, %s85
    %p87 = scmp.eq.s32.totalorder %s19, 0
    %p88 = por %p86, %p87
    %s90 = sadd.s32 %s89, 1
    %p93 = scmp.eq.s32.totalorder %s13, 1
    %p94 = scmp.ne.s32.totalorder %s89, %s91
    %p95 = scmp.eq.s32.totalorder %s13, 0
    %p96 = por %p94, %p95
    %p97 = scmp.ne.s32.totalorder %s89, %s91
    %p98 = scmp.eq.s32.totalorder %s18, 1
    %p99 = por %p97, %p98
    %p100 = scmp.ne.s32.totalorder %s91, %s92
    %p101 = scmp.eq.s32.totalorder %s18, 0
    %p102 = por %p100, %p101
    %p103 = scmp.ne.s32.totalorder %s91, %s92
    %p104 = scmp.eq.s32.totalorder %s19, 1
    %p105 = por %p103, %p104
    %p107 = scmp.ne.s32.totalorder %s92, %s106
    %p108 = scmp.eq.s32.totalorder %s19, 0
    %p109 = por %p107, %p108
    %s111 = sadd.s32 %s110, 1
    %p114 = scmp.eq.s32.totalorder %s13, 1
    %p115 = scmp.ne.s32.totalorder %s110, %s112
    %p116 = scmp.eq.s32.totalorder %s13, 0
    %p117 = por %p115, %p116
    %p118 = scmp.ne.s32.totalorder %s110, %s112
    %p119 = scmp.eq.s32.totalorder %s18, 1
    %p120 = por %p118, %p119
    %p121 = scmp.ne.s32.totalorder %s112, %s113
    %p122 = scmp.eq.s32.totalorder %s18, 0
    %p123 = por %p121, %p122
    %p124 = scmp.ne.s32.totalorder %s112, %s113
    %p125 = scmp.eq.s32.totalorder %s19, 1
    %p126 = por %p124, %p125
    %p128 = scmp.ne.s32.totalorder %s113, %s127
    %p129 = scmp.eq.s32.totalorder %s19, 0
    %p130 = por %p128, %p129
    %s132 = sadd.s32 %s131, 1
    %p135 = scmp.eq.s32.totalorder %s13, 1
    %p136 = scmp.ne.s32.totalorder %s131, %s133
    %p137 = scmp.eq.s32.totalorder %s13, 0
    %p138 = por %p136, %p137
    %p139 = scmp.ne.s32.totalorder %s131, %s133
    %p140 = scmp.eq.s32.totalorder %s18, 1
    %p141 = por %p139, %p140
    %p142 = scmp.ne.s32.totalorder %s133, %s134
    %p143 = scmp.eq.s32.totalorder %s18, 0
    %p144 = por %p142, %p143
    %p145 = scmp.ne.s32.totalorder %s133, %s134
    %p146 = scmp.eq.s32.totalorder %s19, 1
    %p147 = por %p145, %p146
    %p149 = scmp.ne.s32.totalorder %s134, %s148
    %p150 = scmp.eq.s32.totalorder %s19, 0
    %p151 = por %p149, %p150
    %s152 = ssub.s32 %s13, %s20
    %p153 = scmp.eq.s32.totalorder %s152, 0
    %s155 = sadd.s32 %s154, 1
    %s156 = scalar_select %p153, %s154, %s155
    %p159 = pneg %p153
    %p160 = scmp.eq.s32.totalorder %s13, 1
    %p161 = por %p159, %p160
    %p162 = scmp.ne.s32.totalorder %s154, %s157
    %p163 = scmp.eq.s32.totalorder %s13, 0
    %p164 = por %p162, %p163
    %p165 = scmp.ne.s32.totalorder %s154, %s157
    %p166 = scmp.eq.s32.totalorder %s18, 1
    %p167 = por %p165, %p166
    %p168 = scmp.ne.s32.totalorder %s157, %s158
    %p169 = scmp.eq.s32.totalorder %s18, 0
    %p170 = por %p168, %p169
    %p171 = scmp.ne.s32.totalorder %s157, %s158
    %p172 = scmp.eq.s32.totalorder %s19, 1
    %p173 = por %p171, %p172
    %p175 = scmp.ne.s32.totalorder %s158, %s174
    %p176 = scmp.eq.s32.totalorder %s19, 0
    %p177 = por %p175, %p176
    %p178 = scmp.le.s32.totalorder 1, %s13
    %p179 = scmp.lt.s32.totalorder %s13, 3
    %p180 = pnand %p178, %p179
    %p181 = pneg %p180
    // Predicated region
    $region9: #{resblock_forward.1} parent=5 // pred_check
      _
    $region10: #{resblock_forward.1} parent=5 // pred_check_branch
      %183 = sbr.rel (%p180) target = $region12
    $region11: #{resblock_forward.1} parent=5 // pred_region
      %s184 = ssub.s32 %s13, 1
      // Predicated region
      $region13: #{resblock_forward.1} parent=11 // pred_check
        %p185 = pneg %p60
      $region14: #{resblock_forward.1} parent=11 // pred_check_branch
        %187 = sbr.rel (%p185) target = $region16
      $region15: #{resblock_forward.1} parent=11 // pred_region
        _
      $region16: #{resblock_forward.1} parent=11 // pred_fallthru
        _
      // Predicated region
      $region17: #{resblock_forward.1} parent=11 // pred_check
        %p188 = pneg %p81
      $region18: #{resblock_forward.1} parent=11 // pred_check_branch
        %190 = sbr.rel (%p188) target = $region20
      $region19: #{resblock_forward.1} parent=11 // pred_region
        _
      $region20: #{resblock_forward.1} parent=11 // pred_fallthru
        _
      // Predicated region
      $region21: #{resblock_forward.1} parent=11 // pred_check
        %p191 = pneg %p102
      $region22: #{resblock_forward.1} parent=11 // pred_check_branch
        %193 = sbr.rel (%p191) target = $region24
      $region23: #{resblock_forward.1} parent=11 // pred_region
        _
      $region24: #{resblock_forward.1} parent=11 // pred_fallthru
        _
      // Predicated region
      $region25: #{resblock_forward.1} parent=11 // pred_check
        %p194 = pneg %p123
      $region26: #{resblock_forward.1} parent=11 // pred_check_branch
        %196 = sbr.rel (%p194) target = $region28
      $region27: #{resblock_forward.1} parent=11 // pred_region
        _
      $region28: #{resblock_forward.1} parent=11 // pred_fallthru
        _
      // Predicated region
      $region29: #{resblock_forward.1} parent=11 // pred_check
        %p197 = pneg %p144
      $region30: #{resblock_forward.1} parent=11 // pred_check_branch
        %199 = sbr.rel (%p197) target = $region32
      $region31: #{resblock_forward.1} parent=11 // pred_region
        _
      $region32: #{resblock_forward.1} parent=11 // pred_fallthru
        _
    $region12: #{resblock_forward.1} parent=5 // pred_fallthru
      _
    %p200 = scmp.lt.s32.totalorder %s13, 2
    // Predicated region
    $region33: #{resblock_forward.1} parent=5 // pred_check
      %p201 = pneg %p200
    $region34: #{resblock_forward.1} parent=5 // pred_check_branch
      %203 = sbr.rel (%p201) target = $region36
    $region35: #{resblock_forward.1} parent=5 // pred_region
      // Predicated region
      $region37: #{resblock_forward.1} parent=35 // pred_check
        %p204 = pneg %p33
      $region38: #{resblock_forward.1} parent=35 // pred_check_branch
        %206 = sbr.rel (%p204) target = $region40
      $region39: #{resblock_forward.1} parent=35 // pred_region
        %p207 = scmp.lt.s32.totalorder %s13, 1
        %s208 = scalar_select %p207, %s13, 1
        %s209 = smul.addr %s208, 2
        %s210 = smul.addr %s209, 8
        %s211 = scalar_lea.vmem %s0, %s210
      $region40: #{resblock_forward.1} parent=35 // pred_fallthru
        _
    $region36: #{resblock_forward.1} parent=5 // pred_fallthru
      _
    %p212 = scmp.le.s32.totalorder 1, %s13
    %p213 = scmp.lt.s32.totalorder %s13, 3
    %p214 = pnand %p212, %p213
    %p215 = pneg %p214
    // Predicated region
    $region41: #{resblock_forward.1} parent=5 // pred_check
      _
    $region42: #{resblock_forward.1} parent=5 // pred_check_branch
      %217 = sbr.rel (%p214) target = $region44
    $region43: #{resblock_forward.1} parent=5 // pred_region
      %s218 = ssub.s32 %s13, 1
      %p219 = scmp.lt.s32.totalorder %s18, 1
      %s220 = scalar_select %p219, %s18, 1
      %s221 = smul.addr %s220, 2
      %s222 = smul.addr %s221, 8
      %s223 = scalar_lea.vmem %s0, %s222
      %p224 = pneg %p39
      %p225 = pneg %p36
      %p226 = pneg %p60
      %p227 = pneg %p57
      %p228 = pneg %p81
      %p229 = pneg %p78
      %p230 = pneg %p102
      %p231 = pneg %p99
      %p232 = pneg %p123
      %p233 = pneg %p120
      %p234 = pneg %p144
      %p235 = pneg %p141
      %p236 = pneg %p170
      %p237 = pneg %p167
      %p238 = scmp.lt.s32.totalorder %s18, 1
      %s239 = scalar_select %p238, %s18, 1
      %s240 = smul.addr %s239, 2
      %s241 = smul.addr %s240, 8
      %s242 = scalar_lea.vmem %s6, %s241
      %p243 = scmp.lt.s32.totalorder %s18, 1
      %s244 = scalar_select %p243, %s18, 1
      %s245 = smul.addr %s244, 2
      %s246 = smul.addr %s245, 8
      %s247 = scalar_lea.vmem %s0, %s246
      %p248 = scmp.lt.s32.totalorder %s18, 1
      %s249 = scalar_select %p248, %s18, 1
      %s250 = smul.addr %s249, 2
      %s251 = smul.addr %s250, 8
      %s252 = scalar_lea.vmem %s6, %s251
      %vm253 = vcmask 516096
      %254 = vst.msk [vmem:[#allocation2] sm:$0x1] %vm253, 0.0
      %255 = vst.msk [vmem:[#allocation2 + $0x11] sm:$0x1] %vm253, 0.0
      %v256 = vld [vmem:[%s247] sm:$0xff]
      %v257 = vld [vmem:[%s247 + $0x8] sm:$0xff]
      %vm258 = vcmask 523264
      %259 = vst.msk [vmem:[#allocation2 + $0x1] sm:$0xff] %vm258, %v256
      %260 = vst.msk [vmem:[#allocation2 + $0x9] sm:$0xff] %vm258, %v257
      %v261 = vld [vmem:[#allocation2] sm:$0xff]
      %v262 = vld [vmem:[#allocation2 + $0x8] sm:$0xff]
      %v263 = vld [vmem:[%s1] sm:$0xff]
      %v264 = vld [vmem:[%s1 + $0x8] sm:$0xff]
      %v265 = vld [vmem:[%s1 + $0x10] sm:$0xff]
      %v266 = vld [vmem:[%s1 + $0x18] sm:$0xff]
      %v267 = vld [vmem:[%s1 + $0x20] sm:$0xff]
      %v268 = vld [vmem:[%s1 + $0x28] sm:$0xff]
      %v269 = vld [vmem:[%s1 + $0x30] sm:$0xff]
      %v270 = vld [vmem:[%s1 + $0x38] sm:$0xff]
      %v271 = vld [vmem:[#allocation2 + $0x1] sm:$0xff]
      %v272 = vld [vmem:[#allocation2 + $0x9] sm:$0xff]
      %s273 = scalar_lea.vmem %s1, 64
      %v274 = vld [vmem:[%s273] sm:$0xff]
      %v275 = vld [vmem:[%s273 + $0x8] sm:$0xff]
      %v276 = vld [vmem:[%s273 + $0x10] sm:$0xff]
      %v277 = vld [vmem:[%s273 + $0x18] sm:$0xff]
      %v278 = vld [vmem:[%s273 + $0x20] sm:$0xff]
      %v279 = vld [vmem:[%s273 + $0x28] sm:$0xff]
      %v280 = vld [vmem:[%s273 + $0x30] sm:$0xff]
      %v281 = vld [vmem:[%s273 + $0x38] sm:$0xff]
      %v283 = vsel %vm258, %v271, 0
      %v286 = vsel %vm258, %v272, 0
      %288 = vmatpush.msra.mxu0 0.0
      %289 = vmatpush.msra.mxu0 0.0
      %290 = vmatpush.msra.mxu0 0.0
      %291 = vmatpush.msra.mxu0 0.0
      %292 = vmatpush.msra.mxu0 0.0
      %293 = vmatpush.msra.mxu0 0.0
      %294 = vmatpush.msra.mxu0 0.0
      %295 = vmatpush.msra.mxu0 0.0
      %296 = vmatpush.msra.mxu0 %v281
      %297 = vmatpush.msra.mxu0 %v280
      %298 = vmatpush.msra.mxu0 %v279
      %299 = vmatpush.msra.mxu0 %v278
      %300 = vmatpush.msra.mxu0 %v277
      %301 = vmatpush.msra.mxu0 %v276
      %302 = vmatpush.msra.mxu0 %v275
      %303 = vmatpush.msra.mxu0 %v274
      %304 = vmatmul.f32.gmra.mxu0 %v283
      %v305 = vpop.f32.mrf.mxu0
      %v306 = vadd.f32 0.0, %v305
      %307 = vmatmul.f32.gmra.mxu0 %v286
      %v308 = vpop.f32.mrf.mxu0
      %v309 = vadd.f32 0.0, %v308
      %310 = vdwg.mxu0
      %v312 = vsel %vm258, %v261, 0
      %v315 = vsel %vm258, %v262, 0
      %317 = vmatpush.msra.mxu0 0.0
      %318 = vmatpush.msra.mxu0 0.0
      %319 = vmatpush.msra.mxu0 0.0
      %320 = vmatpush.msra.mxu0 0.0
      %321 = vmatpush.msra.mxu0 0.0
      %322 = vmatpush.msra.mxu0 0.0
      %323 = vmatpush.msra.mxu0 0.0
      %324 = vmatpush.msra.mxu0 0.0
      %325 = vmatpush.msra.mxu0 %v270
      %326 = vmatpush.msra.mxu0 %v269
      %327 = vmatpush.msra.mxu0 %v268
      %328 = vmatpush.msra.mxu0 %v267
      %329 = vmatpush.msra.mxu0 %v266
      %330 = vmatpush.msra.mxu0 %v265
      %331 = vmatpush.msra.mxu0 %v264
      %332 = vmatpush.msra.mxu0 %v263
      %333 = vmatmul.f32.gmra.mxu0 %v312
      %v334 = vpop.f32.mrf.mxu0
      %v335 = vadd.f32 %v306, %v334
      %336 = vmatmul.f32.gmra.mxu0 %v315
      %v337 = vpop.f32.mrf.mxu0
      %v338 = vadd.f32 %v309, %v337
      %339 = vdwg.mxu0
      %v340 = vld [vmem:[#allocation2 + $0x2] sm:$0xff]
      %v341 = vld [vmem:[#allocation2 + $0xa] sm:$0xff]
      %s342 = scalar_lea.vmem %s1, 128
      %v343 = vld [vmem:[%s342] sm:$0xff]
      %v344 = vld [vmem:[%s342 + $0x8] sm:$0xff]
      %v345 = vld [vmem:[%s342 + $0x10] sm:$0xff]
      %v346 = vld [vmem:[%s342 + $0x18] sm:$0xff]
      %v347 = vld [vmem:[%s342 + $0x20] sm:$0xff]
      %v348 = vld [vmem:[%s342 + $0x28] sm:$0xff]
      %v349 = vld [vmem:[%s342 + $0x30] sm:$0xff]
      %v350 = vld [vmem:[%s342 + $0x38] sm:$0xff]
      %v352 = vsel %vm258, %v340, 0
      %v355 = vsel %vm258, %v341, 0
      %357 = vmatpush.msra.mxu0 0.0
      %358 = vmatpush.msra.mxu0 0.0
      %359 = vmatpush.msra.mxu0 0.0
      %360 = vmatpush.msra.mxu0 0.0
      %361 = vmatpush.msra.mxu0 0.0
      %362 = vmatpush.msra.mxu0 0.0
      %363 = vmatpush.msra.mxu0 0.0
      %364 = vmatpush.msra.mxu0 0.0
      %365 = vmatpush.msra.mxu0 %v350
      %366 = vmatpush.msra.mxu0 %v349
      %367 = vmatpush.msra.mxu0 %v348
      %368 = vmatpush.msra.mxu0 %v347
      %369 = vmatpush.msra.mxu0 %v346
      %370 = vmatpush.msra.mxu0 %v345
      %371 = vmatpush.msra.mxu0 %v344
      %372 = vmatpush.msra.mxu0 %v343
      %373 = vmatmul.f32.gmra.mxu0 %v352
      %v374 = vpop.f32.mrf.mxu0
      %v375 = vadd.f32 0.0, %v374
      %376 = vmatmul.f32.gmra.mxu0 %v355
      %v377 = vpop.f32.mrf.mxu0
      %v378 = vadd.f32 0.0, %v377
      %379 = vdwg.mxu0
      %v380 = vadd.f32 %v335, %v375
      %v381 = vadd.f32 %v338, %v378
      %v382 = vld [vmem:[%s2] sm:$0x1]
      %v384 = vperm.slane %v382, 0
      %v386 = vadd.f32 %v380, %v384
      %v387 = vadd.f32 %v381, %v384
      %v388 = vmax.f32 %v386, 0.0
      %v389 = vmax.f32 %v387, 0.0
      %390 = vst.msk [vmem:[#allocation2 + $0x1] sm:$0xff] %vm258, %v388
      %391 = vst.msk [vmem:[#allocation2 + $0x9] sm:$0xff] %vm258, %v389
      %v392 = vld [vmem:[#allocation2] sm:$0xff]
      %v393 = vld [vmem:[#allocation2 + $0x8] sm:$0xff]
      %v394 = vld [vmem:[%s3] sm:$0xff]
      %v395 = vld [vmem:[%s3 + $0x8] sm:$0xff]
      %v396 = vld [vmem:[%s3 + $0x10] sm:$0xff]
      %v397 = vld [vmem:[%s3 + $0x18] sm:$0xff]
      %v398 = vld [vmem:[%s3 + $0x20] sm:$0xff]
      %v399 = vld [vmem:[%s3 + $0x28] sm:$0xff]
      %v400 = vld [vmem:[%s3 + $0x30] sm:$0xff]
      %v401 = vld [vmem:[%s3 + $0x38] sm:$0xff]
      %v402 = vld [vmem:[#allocation2 + $0x1] sm:$0xff]
      %v403 = vld [vmem:[#allocation2 + $0x9] sm:$0xff]
      %s404 = scalar_lea.vmem %s3, 64
      %v405 = vld [vmem:[%s404] sm:$0xff]
      %v406 = vld [vmem:[%s404 + $0x8] sm:$0xff]
      %v407 = vld [vmem:[%s404 + $0x10] sm:$0xff]
      %v408 = vld [vmem:[%s404 + $0x18] sm:$0xff]
      %v409 = vld [vmem:[%s404 + $0x20] sm:$0xff]
      %v410 = vld [vmem:[%s404 + $0x28] sm:$0xff]
      %v411 = vld [vmem:[%s404 + $0x30] sm:$0xff]
      %v412 = vld [vmem:[%s404 + $0x38] sm:$0xff]
      %v414 = vsel %vm258, %v402, 0
      %v417 = vsel %vm258, %v403, 0
      %419 = vmatpush.msra.mxu0 0.0
      %420 = vmatpush.msra.mxu0 0.0
      %421 = vmatpush.msra.mxu0 0.0
      %422 = vmatpush.msra.mxu0 0.0
      %423 = vmatpush.msra.mxu0 0.0
      %424 = vmatpush.msra.mxu0 0.0
      %425 = vmatpush.msra.mxu0 0.0
      %426 = vmatpush.msra.mxu0 0.0
      %427 = vmatpush.msra.mxu0 %v412
      %428 = vmatpush.msra.mxu0 %v411
      %429 = vmatpush.msra.mxu0 %v410
      %430 = vmatpush.msra.mxu0 %v409
      %431 = vmatpush.msra.mxu0 %v408
      %432 = vmatpush.msra.mxu0 %v407
      %433 = vmatpush.msra.mxu0 %v406
      %434 = vmatpush.msra.mxu0 %v405
      %435 = vmatmul.f32.gmra.mxu0 %v414
      %v436 = vpop.f32.mrf.mxu0
      %v437 = vadd.f32 0.0, %v436
      %438 = vmatmul.f32.gmra.mxu0 %v417
      %v439 = vpop.f32.mrf.mxu0
      %v440 = vadd.f32 0.0, %v439
      %441 = vdwg.mxu0
      %v443 = vsel %vm258, %v392, 0
      %v446 = vsel %vm258, %v393, 0
      %448 = vmatpush.msra.mxu0 0.0
      %449 = vmatpush.msra.mxu0 0.0
      %450 = vmatpush.msra.mxu0 0.0
      %451 = vmatpush.msra.mxu0 0.0
      %452 = vmatpush.msra.mxu0 0.0
      %453 = vmatpush.msra.mxu0 0.0
      %454 = vmatpush.msra.mxu0 0.0
      %455 = vmatpush.msra.mxu0 0.0
      %456 = vmatpush.msra.mxu0 %v401
      %457 = vmatpush.msra.mxu0 %v400
      %458 = vmatpush.msra.mxu0 %v399
      %459 = vmatpush.msra.mxu0 %v398
      %460 = vmatpush.msra.mxu0 %v397
      %461 = vmatpush.msra.mxu0 %v396
      %462 = vmatpush.msra.mxu0 %v395
      %463 = vmatpush.msra.mxu0 %v394
      %464 = vmatmul.f32.gmra.mxu0 %v443
      %v465 = vpop.f32.mrf.mxu0
      %v466 = vadd.f32 %v437, %v465
      %467 = vmatmul.f32.gmra.mxu0 %v446
      %v468 = vpop.f32.mrf.mxu0
      %v469 = vadd.f32 %v440, %v468
      %470 = vdwg.mxu0
      %v471 = vld [vmem:[#allocation2 + $0x2] sm:$0xff]
      %v472 = vld [vmem:[#allocation2 + $0xa] sm:$0xff]
      %s473 = scalar_lea.vmem %s3, 128
      %v474 = vld [vmem:[%s473] sm:$0xff]
      %v475 = vld [vmem:[%s473 + $0x8] sm:$0xff]
      %v476 = vld [vmem:[%s473 + $0x10] sm:$0xff]
      %v477 = vld [vmem:[%s473 + $0x18] sm:$0xff]
      %v478 = vld [vmem:[%s473 + $0x20] sm:$0xff]
      %v479 = vld [vmem:[%s473 + $0x28] sm:$0xff]
      %v480 = vld [vmem:[%s473 + $0x30] sm:$0xff]
      %v481 = vld [vmem:[%s473 + $0x38] sm:$0xff]
      %v483 = vsel %vm258, %v471, 0
      %v486 = vsel %vm258, %v472, 0
      %488 = vmatpush.msra.mxu0 0.0
      %489 = vmatpush.msra.mxu0 0.0
      %490 = vmatpush.msra.mxu0 0.0
      %491 = vmatpush.msra.mxu0 0.0
      %492 = vmatpush.msra.mxu0 0.0
      %493 = vmatpush.msra.mxu0 0.0
      %494 = vmatpush.msra.mxu0 0.0
      %495 = vmatpush.msra.mxu0 0.0
      %496 = vmatpush.msra.mxu0 %v481
      %497 = vmatpush.msra.mxu0 %v480
      %498 = vmatpush.msra.mxu0 %v479
      %499 = vmatpush.msra.mxu0 %v478
      %500 = vmatpush.msra.mxu0 %v477
      %501 = vmatpush.msra.mxu0 %v476
      %502 = vmatpush.msra.mxu0 %v475
      %503 = vmatpush.msra.mxu0 %v474
      %504 = vmatmul.f32.gmra.mxu0 %v483
      %v505 = vpop.f32.mrf.mxu0
      %v506 = vadd.f32 0.0, %v505
      %507 = vmatmul.f32.gmra.mxu0 %v486
      %v508 = vpop.f32.mrf.mxu0
      %v509 = vadd.f32 0.0, %v508
      %510 = vdwg.mxu0
      %v511 = vadd.f32 %v466, %v506
      %v512 = vadd.f32 %v469, %v509
      %v513 = vld [vmem:[%s4] sm:$0x1]
      %v515 = vperm.slane %v513, 0
      %v517 = vadd.f32 %v511, %v515
      %v518 = vadd.f32 %v512, %v515
      %s519 = sld [smem:[#allocation3]]
      %v520 = vstv %s519
      %v521 = vmul.f32 %v520, %v517
      %v522 = vmul.f32 %v520, %v518
      %v523 = vadd.f32 %v256, %v521
      %v524 = vadd.f32 %v257, %v522
      %v525 = vmax.f32 %v523, 0.0
      %v526 = vmax.f32 %v524, 0.0
      %527 = vst.msk [vmem:[%s252] sm:$0xff] %vm258, %v525
      %528 = vst.msk [vmem:[%s252 + $0x8] sm:$0xff] %vm258, %v526
      %p529 = scmp.lt.s32.totalorder %s18, 1
      %s530 = scalar_select %p529, %s18, 1
      %s531 = smul.addr %s530, 2
      %s532 = smul.addr %s531, 8
      %s533 = scalar_lea.vmem %s6, %s532
      // Predicated region
      $region45: #{resblock_forward.1} parent=43 // pred_check
        %p534 = pneg %p167
      $region46: #{resblock_forward.1} parent=43 // pred_check_branch
        %536 = sbr.rel (%p534) target = $region48
      $region47: #{resblock_forward.1} parent=43 // pred_region
        _
      $region48: #{resblock_forward.1} parent=43 // pred_fallthru
        _
    $region44: #{resblock_forward.1} parent=5 // pred_fallthru
      _
    %p537 = scmp.le.s32.totalorder 2, %s13
    // Predicated region
    $region49: #{resblock_forward.1} parent=5 // pred_check
      %p538 = pneg %p537
    $region50: #{resblock_forward.1} parent=5 // pred_check_branch
      %540 = sbr.rel (%p538) target = $region52
    $region51: #{resblock_forward.1} parent=5 // pred_region
      %s541 = ssub.s32 %s13, 2
      // Predicated region
      $region53: #{resblock_forward.1} parent=51 // pred_check
        %p542 = pneg %p173
      $region54: #{resblock_forward.1} parent=51 // pred_check_branch
        %544 = sbr.rel (%p542) target = $region56
      $region55: #{resblock_forward.1} parent=51 // pred_region
        %p545 = scmp.lt.s32.totalorder %s19, 1
        %s546 = scalar_select %p545, %s19, 1
        %s547 = smul.addr %s546, 2
        %s548 = smul.addr %s547, 8
        %s549 = scalar_lea.vmem %s6, %s548
      $region56: #{resblock_forward.1} parent=51 // pred_fallthru
        _
    $region52: #{resblock_forward.1} parent=5 // pred_fallthru
      _
  $region6: #{resblock_forward.1} parent=0 // loop_footer
    %s17 = sadd.s32 1, %s13
  $region7: #{resblock_forward.1} parent=0 // loop_footer_branch
    %12 = sbr.rel target = $region3
  $region8: #{resblock_forward.1} parent=0 // loop_exit
    _

</llo_original>
